<compile_context>
chip_gen: v6e
topology: v6e:2x2x1
jax: 0.10.0
libtpu: 0.0.40
codegen_flags: <defaults>
</compile_context>

<pallas_src>
import functools

import jax
import jax.numpy as jnp
from jax import lax
from jax.experimental import pallas as pl
from jax.experimental.pallas import tpu as pltpu

EPS = 1e-3
MOMENTUM = 0.01
RMAX = 3.0
DMAX = 5.0
WARMUP_STEPS = 100000

# 48 MiB scoped VMEM: above v5e (16 MiB) / v6e (32 MiB) defaults, below the
# v7x 64 MiB physical ceiling.
_VMEM_LIMIT_BYTES = 48 * 1024 * 1024
# Target bytes for one (rows, lanes) x block; double-buffered in + out plus f32
# temporaries stays comfortably inside the scoped limit above.
_DEFAULT_BLOCK_BUDGET = 4 * 1024 * 1024


def _round_up(x, m):
    return (x + m - 1) // m * m


def _pick_tile_f(n_rows, num_features, itemsize, budget):
    """Feature-tile (lane) count when the whole batch lives in one block.

    Returns None if even a 128-lane block holding all `n_rows` rows would blow
    the per-block VMEM budget (caller falls back to batch-axis tiling).
    """
    per_lane = max(1, n_rows * itemsize)
    max_lanes = budget // per_lane
    if num_features <= max_lanes:
        return num_features                       # one full-F block, no padding
    if max_lanes < 128:
        return None
    tile = (max_lanes // 128) * 128
    # Prefer a multiple-of-128 divisor of F (no ragged last block); among those
    # mildly prefer an even tile count so both v7x TensorCores get equal work.
    best = None
    for cand in range(tile, 127, -128):
        if num_features % cand == 0:
            if best is None:
                best = cand
            if (num_features // cand) % 2 == 0 and cand * 2 >= best:
                return cand
    return best if best is not None else tile     # ragged last block (masked)


def _pick_tiles_2d(n_rows, num_features, itemsize, budget):
    """(row, lane) tile for the batch-tiled kernels (moments / affine)."""
    if num_features <= 512:
        tile_f = num_features                     # full feature dim in one block
    else:
        tile_f = 512                              # ragged fallback (masked writes)
        for cand in range(1024, 127, -128):
            if num_features % cand == 0:
                tile_f = cand
                break
    rows = max(8, (budget // max(1, tile_f * itemsize)) // 8 * 8)
    if rows >= n_rows:
        return n_rows, tile_f
    return rows, tile_f


# --------------------------------------------------------------------------
# Kernels
# --------------------------------------------------------------------------
def _renorm_train_kernel(flag_ref,                            # SMEM: [past_warmup]
                         x_ref, ra_mean_ref, ra_var_ref, scale_ref, bias_ref,
                         y_ref, new_mean_ref, new_var_ref, *, n_rows):
    x = x_ref[...].astype(jnp.float32)                        # (N, TILE_F)
    inv_n = jnp.float32(1.0 / n_rows)
    inv_nm1 = jnp.float32(1.0 / (n_rows - 1))                 # wrapper enforces N >= 2

    ra_mean = ra_mean_ref[...]                                # (1, TILE_F)
    ra_var = ra_var_ref[...]

    # Two-pass moments: x is resident in VMEM so the second sweep is pure VALU
    # work hidden under the next tile's DMA, and it avoids the catastrophic-
    # cancellation / negative-variance risk of sum(x^2) - mean^2.
    batch_mean = jnp.sum(x, axis=0, keepdims=True) * inv_n
    centered = x - batch_mean
    batch_var = jnp.sum(centered * centered, axis=0, keepdims=True) * inv_nm1

    # Batch-renorm correction (selected only after warmup).
    batch_std = jnp.sqrt(batch_var + EPS)
    inv_running_std = lax.rsqrt(ra_var + EPS)
    r = jnp.clip(batch_std * inv_running_std, 1.0 / RMAX, RMAX)
    d = jnp.clip((batch_mean - ra_mean) * inv_running_std, -DMAX, DMAX)
    renorm_mean = batch_mean - d * jnp.sqrt(batch_var) / r
    renorm_var = batch_var / (r * r)

    past_warmup = flag_ref[0] > 0
    custom_mean = jnp.where(past_warmup, renorm_mean, batch_mean)
    custom_var = jnp.where(past_warmup, renorm_var, batch_var)

    # Running-average (EMA) update.
    new_mean_ref[...] = ra_mean + MOMENTUM * (batch_mean - ra_mean)
    new_var_ref[...] = ra_var + MOMENTUM * (batch_var - ra_var)

    # Normalize + affine folded to a single FMA on the (N, TILE_F) hot path.
    inv_std = lax.rsqrt(custom_var + EPS)
    a = scale_ref[...] * inv_std
    b = bias_ref[...] - custom_mean * a
    y_ref[...] = (x * a + b).astype(y_ref.dtype)


def _moments_kernel(x_ref, sum_ref, sumsq_ref, *, n_rows, tile_n):
    """Accumulate per-feature sum(x) and sum(x^2) across batch tiles."""
    n_idx = pl.program_id(1)

    @pl.when(n_idx == 0)
    def _():
        sum_ref[...] = jnp.zeros_like(sum_ref)
        sumsq_ref[...] = jnp.zeros_like(sumsq_ref)

    x = x_ref[...].astype(jnp.float32)                        # (TILE_N, TILE_F)
    row = n_idx * tile_n + lax.broadcasted_iota(jnp.int32, x.shape, 0)
    x = jnp.where(row < n_rows, x, 0.0)                       # mask ragged batch tail
    sum_ref[...] += jnp.sum(x, axis=0, keepdims=True)
    sumsq_ref[...] += jnp.sum(x * x, axis=0, keepdims=True)


def _affine_kernel(x_ref, a_ref, b_ref, y_ref):
    """y = x * a + b with per-feature a, b (folded normalize + affine)."""
    y_ref[...] = (x_ref[...].astype(jnp.float32) * a_ref[...]
                  + b_ref[...]).astype(y_ref.dtype)


# --------------------------------------------------------------------------
# Pallas-call helpers
# --------------------------------------------------------------------------
def _batch_moments(x, budget):
    n_rows, num_features = x.shape
    itemsize = jnp.dtype(x.dtype).itemsize
    tile_n, tile_f = _pick_tiles_2d(n_rows, num_features, itemsize, budget)
    grid = (pl.cdiv(num_features, tile_f), pl.cdiv(n_rows, tile_n))
    vec_spec = pl.BlockSpec((1, tile_f), lambda f, n: (0, f))
    sum_x, sum_x2 = pl.pallas_call(
        functools.partial(_moments_kernel, n_rows=n_rows, tile_n=tile_n),
        out_shape=(jax.ShapeDtypeStruct((1, num_features), jnp.float32),
                   jax.ShapeDtypeStruct((1, num_features), jnp.float32)),
        grid=grid,
        in_specs=[pl.BlockSpec((tile_n, tile_f), lambda f, n: (n, f))],
        out_specs=[vec_spec, vec_spec],
        compiler_params=pltpu.CompilerParams(
            dimension_semantics=("parallel", "arbitrary"),
            vmem_limit_bytes=_VMEM_LIMIT_BYTES),
        cost_estimate=pl.CostEstimate(
            flops=int(4 * n_rows * num_features),
            transcendentals=0,
            bytes_accessed=int(n_rows * num_features * itemsize
                               + 2 * num_features * 4)),
    )(x)
    return sum_x[0], sum_x2[0]


def _affine_apply(x, a, b, budget):
    n_rows, num_features = x.shape
    itemsize = jnp.dtype(x.dtype).itemsize
    tile_n, tile_f = _pick_tiles_2d(n_rows, num_features, itemsize, budget)
    grid = (pl.cdiv(n_rows, tile_n), pl.cdiv(num_features, tile_f))
    mat_spec = pl.BlockSpec((tile_n, tile_f), lambda n, f: (n, f))
    vec_spec = pl.BlockSpec((1, tile_f), lambda n, f: (0, f))
    return pl.pallas_call(
        _affine_kernel,
        out_shape=jax.ShapeDtypeStruct((n_rows, num_features), x.dtype),
        grid=grid,
        in_specs=[mat_spec, vec_spec, vec_spec],
        out_specs=mat_spec,
        compiler_params=pltpu.CompilerParams(
            dimension_semantics=("parallel", "parallel"),
            vmem_limit_bytes=_VMEM_LIMIT_BYTES),
        cost_estimate=pl.CostEstimate(
            flops=int(2 * n_rows * num_features),
            transcendentals=0,
            bytes_accessed=int(2 * n_rows * num_features * itemsize
                               + 2 * num_features * 4)),
    )(x,
      a.reshape(1, num_features).astype(jnp.float32),
      b.reshape(1, num_features).astype(jnp.float32))


# --------------------------------------------------------------------------
# Wrapper
# --------------------------------------------------------------------------
@functools.partial(jax.jit, static_argnames=("training", "block_budget_bytes"))
def batch_renorm_forward(x, ra_mean, ra_var, scale, bias, steps, *,
                         training=True,
                         block_budget_bytes=_DEFAULT_BLOCK_BUDGET):
    """Returns (y, new_ra_mean, new_ra_var, new_steps).  y keeps x.dtype."""
    n_rows, num_features = x.shape
    itemsize = jnp.dtype(x.dtype).itemsize

    ra_mean_f = ra_mean.reshape(num_features).astype(jnp.float32)
    ra_var_f = ra_var.reshape(num_features).astype(jnp.float32)
    scale_f = scale.reshape(num_features).astype(jnp.float32)
    bias_f = bias.reshape(num_features).astype(jnp.float32)

    if not training:
        # Eval: fold running stats + affine into a single per-feature FMA; the
        # running statistics are returned unchanged (caller's dtype/shape).
        a = scale_f * lax.rsqrt(ra_var_f + EPS)
        b = bias_f - ra_mean_f * a
        y = _affine_apply(x, a, b, block_budget_bytes)
        return y, ra_mean, ra_var, steps

    if n_rows < 2:
        raise ValueError("training-mode BatchRenorm needs a batch of >= 2 "
                         "(unbiased variance divides by N - 1).")

    past_warmup = jnp.asarray(steps, jnp.int32) > WARMUP_STEPS
    tile_f = _pick_tile_f(n_rows, num_features, itemsize, block_budget_bytes)

    if tile_f is not None:
        # Fused single-sweep path: the whole batch of a feature tile fits VMEM.
        flag = past_warmup.astype(jnp.int32).reshape(1)
        num_f_tiles = pl.cdiv(num_features, tile_f)
        mat_spec = pl.BlockSpec((n_rows, tile_f), lambda i, fl: (0, i))
        vec_spec = pl.BlockSpec((1, tile_f), lambda i, fl: (0, i))
        y, new_mean, new_var = pl.pallas_call(
            functools.partial(_renorm_train_kernel, n_rows=n_rows),
            out_shape=(
                jax.ShapeDtypeStruct((n_rows, num_features), x.dtype),
                jax.ShapeDtypeStruct((1, num_features), jnp.float32),
                jax.ShapeDtypeStruct((1, num_features), jnp.float32),
            ),
            grid_spec=pltpu.PrefetchScalarGridSpec(
                num_scalar_prefetch=1,
                grid=(num_f_tiles,),
                in_specs=[mat_spec, vec_spec, vec_spec, vec_spec, vec_spec],
                out_specs=[mat_spec, vec_spec, vec_spec],
            ),
            compiler_params=pltpu.CompilerParams(
                dimension_semantics=("parallel",),
                vmem_limit_bytes=_VMEM_LIMIT_BYTES),
            cost_estimate=pl.CostEstimate(
                flops=int(10 * n_rows * num_features),
                transcendentals=int(3 * num_features),
                bytes_accessed=int(2 * n_rows * num_features * itemsize
                                   + 6 * num_features * 4)),
        )(flag, x,
          ra_mean_f.reshape(1, -1), ra_var_f.reshape(1, -1),
          scale_f.reshape(1, -1), bias_f.reshape(1, -1))
        new_mean = new_mean[0]
        new_var = new_var[0]
    else:
        # Batch-tiled path for batches too large to hold in one VMEM block:
        # one sweep of x accumulates per-feature sums, the tiny per-feature
        # renorm math runs in plain XLA, a second sweep applies the folded FMA.
        sum_x, sum_x2 = _batch_moments(x, block_budget_bytes)
        batch_mean = sum_x / n_rows
        batch_var = jnp.maximum(sum_x2 - sum_x * batch_mean, 0.0) / (n_rows - 1)

        batch_std = jnp.sqrt(batch_var + EPS)
        running_std = jnp.sqrt(ra_var_f + EPS)
        r = jnp.clip(batch_std / running_std, 1.0 / RMAX, RMAX)
        d = jnp.clip((batch_mean - ra_mean_f) / running_std, -DMAX, DMAX)
        renorm_mean = batch_mean - d * jnp.sqrt(batch_var) / r
        renorm_var = batch_var / (r * r)

        custom_mean = jnp.where(past_warmup, renorm_mean, batch_mean)
        custom_var = jnp.where(past_warmup, renorm_var, batch_var)

        new_mean = ra_mean_f + MOMENTUM * (batch_mean - ra_mean_f)
        new_var = ra_var_f + MOMENTUM * (batch_var - ra_var_f)

        a = scale_f * lax.rsqrt(custom_var + EPS)
        b = bias_f - custom_mean * a
        y = _affine_apply(x, a, b, block_budget_bytes)

    return (y, new_mean.astype(ra_mean.dtype), new_var.astype(ra_var.dtype),
            steps + 1)


# --------------------------------------------------------------------------
# Pure-JAX reference (faithful port of the PyTorch forward)
# --------------------------------------------------------------------------
def _reference_forward(x, ra_mean, ra_var, scale, bias, steps, training=True):
    xf = x.astype(jnp.float32)
    if training:
        batch_mean = xf.mean(axis=0)
        batch_var = xf.var(axis=0, ddof=1)
        batch_std = jnp.sqrt(batch_var + EPS)
        if steps > WARMUP_STEPS:
            running_std = jnp.sqrt(ra_var + EPS)
            r = jnp.clip(batch_std / running_std, 1.0 / RMAX, RMAX)
            d = jnp.clip((batch_mean - ra_mean) / running_std, -DMAX, DMAX)
            custom_mean = batch_mean - d * jnp.sqrt(batch_var) / r
            custom_var = batch_var / r ** 2
        else:
            custom_mean, custom_var = batch_mean, batch_var
        ra_mean = ra_mean + MOMENTUM * (batch_mean - ra_mean)
        ra_var = ra_var + MOMENTUM * (batch_var - ra_var)
    else:
        custom_mean, custom_var = ra_mean, ra_var
    y = (xf - custom_mean[None]) / jnp.sqrt(custom_var[None] + EPS)
    y = scale * y + bias
    return y.astype(x.dtype), ra_mean, ra_var


def _check(y, m, v, y_ref, m_ref, v_ref, atol=1e-4, rtol=1e-4):
    assert jnp.allclose(y.astype(jnp.float32), y_ref.astype(jnp.float32),
                        atol=atol, rtol=rtol)
    assert jnp.allclose(jnp.asarray(m, jnp.float32),
                        jnp.asarray(m_ref, jnp.float32), atol=atol, rtol=rtol)
    assert jnp.allclose(jnp.asarray(v, jnp.float32),
                        jnp.asarray(v_ref, jnp.float32), atol=atol, rtol=rtol)


if __name__ == "__main__":
    key = jax.random.PRNGKey(0)
    k1, k2 = jax.random.split(key)

    # ---- test 1: warmup phase (BatchNorm behaviour), small demo shape ----
    N, F = 8, 32
    x = jax.random.normal(k1, (N, F), dtype=jnp.float32) * 2.0 + 0.5
    ra_mean = jnp.zeros((F,), jnp.float32)
    ra_var = jnp.ones((F,), jnp.float32)
    scale = jnp.ones((F,), jnp.float32)
    bias = jnp.zeros((F,), jnp.float32)

    y, nm, nv, ns = batch_renorm_forward(x, ra_mean, ra_var, scale, bias, 0,
                                         training=True)
    jax.block_until_ready((y, nm, nv))
    y_r, m_r, v_r = _reference_forward(x, ra_mean, ra_var, scale, bias, 0,
                                       training=True)
    _check(y, nm, nv, y_r, m_r, v_r)
    assert int(ns) == 1

    # ---- test 2: past warmup (renorm path), multi-feature-tile grid ----
    N2, F2 = 16, 1280
    ka, kb, kc, kd, ke = jax.random.split(k2, 5)
    x2 = jax.random.normal(ka, (N2, F2), dtype=jnp.float32)
    m2 = jax.random.normal(kb, (F2,), dtype=jnp.float32) * 0.1
    v2 = jax.random.uniform(kc, (F2,), dtype=jnp.float32, minval=0.5, maxval=1.5)
    s2 = jax.random.normal(kd, (F2,), dtype=jnp.float32) * 0.2 + 1.0
    b2 = jax.random.normal(ke, (F2,), dtype=jnp.float32) * 0.1
    steps2 = WARMUP_STEPS + 5

    # Small block budget forces TILE_F=640 -> grid=(2,) (even tile count).
    y2, nm2, nv2, ns2 = batch_renorm_forward(x2, m2, v2, s2, b2, steps2,
                                             training=True,
                                             block_budget_bytes=64 * 1024)
    jax.block_until_ready((y2, nm2, nv2))
    y2_r, m2_r, v2_r = _reference_forward(x2, m2, v2, s2, b2, steps2,
                                          training=True)
    _check(y2, nm2, nv2, y2_r, m2_r, v2_r)
    assert int(ns2) == steps2 + 1

    # ---- test 3: batch-axis-tiled path (batch too large for one block) ----
    N3, F3 = 60, 200
    kf, kg = jax.random.split(ka)
    x3 = jax.random.normal(kf, (N3, F3), dtype=jnp.float32) * 1.5 - 0.3
    m3 = jnp.zeros((F3,), jnp.float32)
    v3 = jnp.ones((F3,), jnp.float32)
    s3 = jax.random.normal(kg, (F3,), dtype=jnp.float32) * 0.1 + 1.0
    b3 = jnp.zeros((F3,), jnp.float32)
    y3, nm3, nv3, ns3 = batch_renorm_forward(x3, m3, v3, s3, b3, 0,
                                             training=True,
                                             block_budget_bytes=16 * 1024)
    jax.block_until_ready((y3, nm3, nv3))
    y3_r, m3_r, v3_r = _reference_forward(x3, m3, v3, s3, b3, 0, training=True)
    _check(y3, nm3, nv3, y3_r, m3_r, v3_r)
    assert int(ns3) == 1

    # ---- test 4: eval mode (running stats used, not updated) ----
    y4, nm4, nv4, ns4 = batch_renorm_forward(x2, m2, v2, s2, b2, steps2,
                                             training=False)
    jax.block_until_ready(y4)
    y4_r, m4_r, v4_r = _reference_forward(x2, m2, v2, s2, b2, steps2,
                                          training=False)
    _check(y4, nm4, nv4, y4_r, m4_r, v4_r)
    assert int(ns4) == steps2

    print("KERNEL_OK")
</pallas_src>

<mosaic_0001>
module attributes {stable_mosaic.version = 11 : i64} {
  func.func @_renorm_train_kernel(%arg0: i32, %arg1: memref<1xi32, #tpu.memory_space<smem>>, %arg2: memref<8x32xf32, #tpu.memory_space<vmem>>, %arg3: memref<1x32xf32, #tpu.memory_space<vmem>>, %arg4: memref<1x32xf32, #tpu.memory_space<vmem>>, %arg5: memref<1x32xf32, #tpu.memory_space<vmem>>, %arg6: memref<1x32xf32, #tpu.memory_space<vmem>>, %arg7: memref<8x32xf32, #tpu.memory_space<vmem>>, %arg8: memref<1x32xf32, #tpu.memory_space<vmem>>, %arg9: memref<1x32xf32, #tpu.memory_space<vmem>>) attributes {dimension_semantics = [#tpu.dimension_semantics<parallel>], iteration_bounds = array<i64: 1>, scalar_prefetch = 1 : i64, scratch_operands = 0 : i64, tpu.core_type = #tpu.core_type<tc>, window_params = [{transform_indices = @transform_0, window_bounds = array<i64: 8, 32>}, {transform_indices = @transform_1, window_bounds = array<i64: 1, 32>}, {transform_indices = @transform_2, window_bounds = array<i64: 1, 32>}, {transform_indices = @transform_3, window_bounds = array<i64: 1, 32>}, {transform_indices = @transform_4, window_bounds = array<i64: 1, 32>}, {transform_indices = @transform_5, window_bounds = array<i64: 8, 32>}, {transform_indices = @transform_6, window_bounds = array<i64: 1, 32>}, {transform_indices = @transform_7, window_bounds = array<i64: 1, 32>}]} {
    %c0 = arith.constant 0 : index
    %c0_0 = arith.constant 0 : index
    %0 = vector.load %arg2[%c0, %c0_0] : memref<8x32xf32, #tpu.memory_space<vmem>>, vector<8x32xf32>
    %c0_1 = arith.constant 0 : index
    %c0_2 = arith.constant 0 : index
    %1 = vector.load %arg3[%c0_1, %c0_2] : memref<1x32xf32, #tpu.memory_space<vmem>>, vector<1x32xf32>
    %c0_3 = arith.constant 0 : index
    %c0_4 = arith.constant 0 : index
    %2 = vector.load %arg4[%c0_3, %c0_4] : memref<1x32xf32, #tpu.memory_space<vmem>>, vector<1x32xf32>
    %cst = arith.constant dense<0.000000e+00> : vector<32xf32>
    %3 = vector.multi_reduction <add>, %0, %cst [0] : vector<8x32xf32> to vector<32xf32>
    %4 = vector.shape_cast %3 : vector<32xf32> to vector<1x32xf32>
    %cst_5 = arith.constant 1.250000e-01 : f32
    %5 = vector.broadcast %cst_5 : f32 to vector<1x32xf32>
    %6 = arith.mulf %4, %5 : vector<1x32xf32>
    %7 = vector.broadcast %6 : vector<1x32xf32> to vector<8x32xf32>
    %8 = arith.subf %0, %7 : vector<8x32xf32>
    %9 = arith.mulf %8, %8 : vector<8x32xf32>
    %cst_6 = arith.constant dense<0.000000e+00> : vector<32xf32>
    %10 = vector.multi_reduction <add>, %9, %cst_6 [0] : vector<8x32xf32> to vector<32xf32>
    %11 = vector.shape_cast %10 : vector<32xf32> to vector<1x32xf32>
    %cst_7 = arith.constant 0.142857149 : f32
    %12 = vector.broadcast %cst_7 : f32 to vector<1x32xf32>
    %13 = arith.mulf %11, %12 : vector<1x32xf32>
    %cst_8 = arith.constant 1.000000e-03 : f32
    %14 = vector.broadcast %cst_8 : f32 to vector<1x32xf32>
    %15 = arith.addf %13, %14 : vector<1x32xf32>
    %16 = math.sqrt %15 : vector<1x32xf32>
    %cst_9 = arith.constant 1.000000e-03 : f32
    %17 = vector.broadcast %cst_9 : f32 to vector<1x32xf32>
    %18 = arith.addf %2, %17 : vector<1x32xf32>
    %19 = math.rsqrt %18 : vector<1x32xf32>
    %20 = arith.mulf %16, %19 : vector<1x32xf32>
    %cst_10 = arith.constant 0.333333343 : f32
    %cst_11 = arith.constant 3.000000e+00 : f32
    %21 = vector.broadcast %cst_10 : f32 to vector<1x32xf32>
    %22 = arith.maximumf %21, %20 : vector<1x32xf32>
    %23 = vector.broadcast %cst_11 : f32 to vector<1x32xf32>
    %24 = arith.minimumf %23, %22 : vector<1x32xf32>
    %25 = arith.subf %6, %1 : vector<1x32xf32>
    %26 = arith.mulf %25, %19 : vector<1x32xf32>
    %cst_12 = arith.constant -5.000000e+00 : f32
    %cst_13 = arith.constant 5.000000e+00 : f32
    %27 = vector.broadcast %cst_12 : f32 to vector<1x32xf32>
    %28 = arith.maximumf %27, %26 : vector<1x32xf32>
    %29 = vector.broadcast %cst_13 : f32 to vector<1x32xf32>
    %30 = arith.minimumf %29, %28 : vector<1x32xf32>
    %31 = math.sqrt %13 : vector<1x32xf32>
    %32 = arith.mulf %30, %31 : vector<1x32xf32>
    %33 = arith.divf %32, %24 : vector<1x32xf32>
    %34 = arith.subf %6, %33 : vector<1x32xf32>
    %35 = arith.mulf %24, %24 : vector<1x32xf32>
    %36 = arith.divf %13, %35 : vector<1x32xf32>
    %c0_14 = arith.constant 0 : index
    %37 = memref.load %arg1[%c0_14] : memref<1xi32, #tpu.memory_space<smem>>
    %c0_i32 = arith.constant 0 : i32
    %38 = arith.cmpi sgt, %37, %c0_i32 : i32
    %39 = arith.select %38, %34, %6 : vector<1x32xf32>
    %40 = arith.select %38, %36, %13 : vector<1x32xf32>
    %41 = arith.subf %6, %1 : vector<1x32xf32>
    %cst_15 = arith.constant 0.00999999977 : f32
    %42 = vector.broadcast %cst_15 : f32 to vector<1x32xf32>
    %43 = arith.mulf %42, %41 : vector<1x32xf32>
    %44 = arith.addf %1, %43 : vector<1x32xf32>
    %c0_16 = arith.constant 0 : index
    %c0_17 = arith.constant 0 : index
    %45 = vector.load %arg8[%c0_16, %c0_17] : memref<1x32xf32, #tpu.memory_space<vmem>>, vector<1x32xf32>
    tpu.vector_store %arg8[%c0_16, %c0_17], %44 {strides = array<i32>} : memref<1x32xf32, #tpu.memory_space<vmem>>, vector<1x32xf32>,
    %46 = arith.subf %13, %2 : vector<1x32xf32>
    %cst_18 = arith.constant 0.00999999977 : f32
    %47 = vector.broadcast %cst_18 : f32 to vector<1x32xf32>
    %48 = arith.mulf %47, %46 : vector<1x32xf32>
    %49 = arith.addf %2, %48 : vector<1x32xf32>
    %c0_19 = arith.constant 0 : index
    %c0_20 = arith.constant 0 : index
    %50 = vector.load %arg9[%c0_19, %c0_20] : memref<1x32xf32, #tpu.memory_space<vmem>>, vector<1x32xf32>
    tpu.vector_store %arg9[%c0_19, %c0_20], %49 {strides = array<i32>} : memref<1x32xf32, #tpu.memory_space<vmem>>, vector<1x32xf32>,
    %cst_21 = arith.constant 1.000000e-03 : f32
    %51 = vector.broadcast %cst_21 : f32 to vector<1x32xf32>
    %52 = arith.addf %40, %51 : vector<1x32xf32>
    %53 = math.rsqrt %52 : vector<1x32xf32>
    %c0_22 = arith.constant 0 : index
    %c0_23 = arith.constant 0 : index
    %54 = vector.load %arg5[%c0_22, %c0_23] : memref<1x32xf32, #tpu.memory_space<vmem>>, vector<1x32xf32>
    %55 = arith.mulf %54, %53 : vector<1x32xf32>
    %c0_24 = arith.constant 0 : index
    %c0_25 = arith.constant 0 : index
    %56 = vector.load %arg6[%c0_24, %c0_25] : memref<1x32xf32, #tpu.memory_space<vmem>>, vector<1x32xf32>
    %57 = arith.mulf %39, %55 : vector<1x32xf32>
    %58 = arith.subf %56, %57 : vector<1x32xf32>
    %59 = vector.broadcast %55 : vector<1x32xf32> to vector<8x32xf32>
    %60 = arith.mulf %0, %59 : vector<8x32xf32>
    %61 = vector.broadcast %58 : vector<1x32xf32> to vector<8x32xf32>
    %62 = arith.addf %60, %61 : vector<8x32xf32>
    %c0_26 = arith.constant 0 : index
    %c0_27 = arith.constant 0 : index
    %63 = vector.load %arg7[%c0_26, %c0_27] : memref<8x32xf32, #tpu.memory_space<vmem>>, vector<8x32xf32>
    tpu.vector_store %arg7[%c0_26, %c0_27], %62 {strides = array<i32>} : memref<8x32xf32, #tpu.memory_space<vmem>>, vector<8x32xf32>,
    return
  }
  func.func @transform_0(%arg0: i32, %arg1: memref<1xi32, #tpu.memory_space<smem>>) -> (i32, i32) {
    %c0_i32 = arith.constant 0 : i32
    %c0_i32_0 = arith.constant 0 : i32
    return %c0_i32, %arg0 : i32, i32
  }
  func.func @transform_1(%arg0: i32, %arg1: memref<1xi32, #tpu.memory_space<smem>>) -> (i32, i32) {
    %c0_i32 = arith.constant 0 : i32
    %c0_i32_0 = arith.constant 0 : i32
    return %c0_i32, %arg0 : i32, i32
  }
  func.func @transform_2(%arg0: i32, %arg1: memref<1xi32, #tpu.memory_space<smem>>) -> (i32, i32) {
    %c0_i32 = arith.constant 0 : i32
    %c0_i32_0 = arith.constant 0 : i32
    return %c0_i32, %arg0 : i32, i32
  }
  func.func @transform_3(%arg0: i32, %arg1: memref<1xi32, #tpu.memory_space<smem>>) -> (i32, i32) {
    %c0_i32 = arith.constant 0 : i32
    %c0_i32_0 = arith.constant 0 : i32
    return %c0_i32, %arg0 : i32, i32
  }
  func.func @transform_4(%arg0: i32, %arg1: memref<1xi32, #tpu.memory_space<smem>>) -> (i32, i32) {
    %c0_i32 = arith.constant 0 : i32
    %c0_i32_0 = arith.constant 0 : i32
    return %c0_i32, %arg0 : i32, i32
  }
  func.func @transform_5(%arg0: i32, %arg1: memref<1xi32, #tpu.memory_space<smem>>) -> (i32, i32) {
    %c0_i32 = arith.constant 0 : i32
    %c0_i32_0 = arith.constant 0 : i32
    return %c0_i32, %arg0 : i32, i32
  }
  func.func @transform_6(%arg0: i32, %arg1: memref<1xi32, #tpu.memory_space<smem>>) -> (i32, i32) {
    %c0_i32 = arith.constant 0 : i32
    %c0_i32_0 = arith.constant 0 : i32
    return %c0_i32, %arg0 : i32, i32
  }
  func.func @transform_7(%arg0: i32, %arg1: memref<1xi32, #tpu.memory_space<smem>>) -> (i32, i32) {
    %c0_i32 = arith.constant 0 : i32
    %c0_i32_0 = arith.constant 0 : i32
    return %c0_i32, %arg0 : i32, i32
  }
}

</mosaic_0001>

<llo_original>
// kernel: batch_renorm_forward.1
$region0: #{batch_renorm_forward.1}
  #allocation0 [shape = 'u32[]', space=smem, size = 0x4, offset = 0x4, fixed_abs, tag = 'smem constant byte address 0x4 - core index']
  #allocation1 [shape = 'u32[144,128]{1,0:T(1,128)}', space=vmem, size = 0x12000, scoped, tag = 'internal scratch']
  #allocation2 [shape = 's32[1]{0}', space=sflag, size = 0x4, scoped, tag = 'scoped memory for batch_renorm_forward.1']
  #allocation3 [shape = 's32[1]{0:T(128)S(6)}', space=smem, size = 0x200, scoped, tag = 'prefetched SMEM operand 0']
  %s0 = inlined_call_operand.<no memory space> [shape: s32[1], index: 0, kind: input, shape index: {}]
  %s1 = inlined_call_operand.vmem [shape: f32[8,32], index: 1, kind: input, shape index: {}]
  %s2 = inlined_call_operand.vmem [shape: f32[1,32], index: 2, kind: input, shape index: {}]
  %s3 = inlined_call_operand.vmem [shape: f32[1,32], index: 3, kind: input, shape index: {}]
  %s4 = inlined_call_operand.vmem [shape: f32[1,32], index: 4, kind: input, shape index: {}]
  %s5 = inlined_call_operand.vmem [shape: f32[1,32], index: 5, kind: input, shape index: {}]
  %s6 = inlined_call_operand.hbm [shape: f32[8,32], index: 6, kind: output, shape index: {0}]
  %s7 = inlined_call_operand.hbm [shape: f32[1,32], index: 7, kind: output, shape index: {1}]
  %s8 = inlined_call_operand.hbm [shape: f32[1,32], index: 8, kind: output, shape index: {2}]
  %9 = xla_tuple %s6, %s7, %s8
  %s10 = sld [smem:[#allocation0]]
  $region46: #{batch_renorm_forward.1} parent=0
    _
  %s12 = ssub.s32 1, %s10
  %s13 = scalar_select 0, %s12, %s10
  %14 = sst [smem:[#allocation3]] %s0
  $region1: #{batch_renorm_forward.1} parent=0
    #allocation4 [shape = 'u8[4096]{0}', space=vmem, size = 0x1000, scoped, tag = 'output window, operand 0, single buffered']
    #allocation5 [shape = 's32[1]{0}', space=sflag, size = 0x4, scoped, tag = 'scoped memory for batch_renorm_forward.1']
    #allocation6 [shape = 'u8[512]{0}', space=vmem, size = 0x400, scoped, tag = 'output window, operand 1, single buffered']
    #allocation7 [shape = 's32[1]{0}', space=sflag, size = 0x4, scoped, tag = 'scoped memory for batch_renorm_forward.1']
    #allocation8 [shape = 'u8[512]{0}', space=vmem, size = 0x400, scoped, tag = 'output window, operand 2, single buffered']
    %15 = vsyncpa [#allocation5], 0
    %16 = vsyncpa [#allocation7], 0
    // Predicated region
    $region2: #{batch_renorm_forward.1} parent=1 // pred_check
      _
    $region3: #{batch_renorm_forward.1} parent=1 // pred_check_branch
      %18 = sbr.rel (0) target = $region5
    $region4: #{batch_renorm_forward.1} parent=1 // pred_region
      _
    $region5: #{batch_renorm_forward.1} parent=1 // pred_fallthru
      _
    // Predicated region
    $region6: #{batch_renorm_forward.1} parent=1 // pred_check
      _
    $region7: #{batch_renorm_forward.1} parent=1 // pred_check_branch
      %20 = sbr.rel (0) target = $region9
    $region8: #{batch_renorm_forward.1} parent=1 // pred_region
      _
    $region9: #{batch_renorm_forward.1} parent=1 // pred_fallthru
      _
    // Predicated region
    $region10: #{batch_renorm_forward.1} parent=1 // pred_check
      _
    $region11: #{batch_renorm_forward.1} parent=1 // pred_check_branch
      %22 = sbr.rel (0) target = $region13
    $region12: #{batch_renorm_forward.1} parent=1 // pred_region
      _
    $region13: #{batch_renorm_forward.1} parent=1 // pred_fallthru
      _
    // Predicated region
    $region14: #{batch_renorm_forward.1} parent=1 // pred_check
      _
    $region15: #{batch_renorm_forward.1} parent=1 // pred_check_branch
      %24 = sbr.rel (0) target = $region17
    $region16: #{batch_renorm_forward.1} parent=1 // pred_region
      _
    $region17: #{batch_renorm_forward.1} parent=1 // pred_fallthru
      _
    // Predicated region
    $region18: #{batch_renorm_forward.1} parent=1 // pred_check
      _
    $region19: #{batch_renorm_forward.1} parent=1 // pred_check_branch
      %26 = sbr.rel (0) target = $region21
    $region20: #{batch_renorm_forward.1} parent=1 // pred_region
      _
    $region21: #{batch_renorm_forward.1} parent=1 // pred_fallthru
      _
    %v27 = vld [vmem:[%s1] sm:$0xff]
    %v28 = vld [vmem:[%s2] sm:$0x1]
    %v29 = vld [vmem:[%s3] sm:$0x1]
    %vm30 = vcmask 261120
    %v31 = vsel %vm30, %v27, 0.0
    %v32 = vrot.slane %v31, 4
    %v33 = vadd.f32 %v31, %v32
    %v34 = vrot.slane %v33, 2
    %v35 = vadd.f32 %v33, %v34
    %v36 = vrot.slane %v35, 1
    %v37 = vadd.f32 %v35, %v36
    %v38 = vmul.f32 %v37, 0.125
    %v39 = vsub.f32 %v27, %v38
    %v40 = vmul.f32 %v39, %v39
    %v41 = vsel %vm30, %v40, 0.0
    %v42 = vrot.slane %v41, 4
    %v43 = vadd.f32 %v41, %v42
    %v44 = vrot.slane %v43, 2
    %v45 = vadd.f32 %v43, %v44
    %v46 = vrot.slane %v45, 1
    %v47 = vadd.f32 %v45, %v46
    %v48 = vmul.f32 %v47, 0.14285715
    %v49 = vadd.f32 %v48, 0.001
    %v50 = vrsqrt.pop %v49
    %v51 = vmul.f32 %v49, %v50
    %vm52 = vcmp.eq.f32.partialorder %v49, inf
    %v53 = vsel %vm52, %v49, %v51
    %vm54 = vcmp.eq.f32.partialorder %v49, 0.0
    %v55 = vand.u32 %v49, 2147483648
    %v56 = vsel %vm54, %v55, %v53
    %v57 = vadd.f32 %v29, 0.001
    %v58 = vrsqrt.pop %v57
    %v59 = vmul.f32 %v56, %v58
    %v60 = vmax.f32 %v59, 0.33333334
    %v61 = vmin.f32 %v60, 3.0
    %v62 = vsub.f32 %v38, %v28
    %v63 = vmul.f32 %v62, %v58
    %v64 = vmax.f32 %v63, -5.0
    %v65 = vmin.f32 %v64, 5.0
    %v66 = vrsqrt.pop %v48
    %v67 = vmul.f32 %v48, %v66
    %vm68 = vcmp.eq.f32.partialorder %v48, inf
    %v69 = vsel %vm68, %v48, %v67
    %vm70 = vcmp.eq.f32.partialorder %v48, 0.0
    %v71 = vand.u32 %v48, 2147483648
    %v72 = vsel %vm70, %v71, %v69
    %v73 = vmul.f32 %v65, %v72
    %v74 = vrcp.pop %v61
    %v75 = vmul.f32 %v73, %v74
    %v76 = vsub.f32 %v38, %v75
    %v77 = vmul.f32 %v61, %v61
    %v78 = vrcp.pop %v77
    %v79 = vmul.f32 %v48, %v78
    %s80 = sld [smem:[#allocation3]]
    %p81 = scmp.gt.s32.totalorder %s80, 0
    %s82 = scalar_select %p81, 1, 0
    %v83 = vstv %s82
    %vm84 = vcmp.eq.s32.totalorder %v83, 1
    %v85 = vsel %vm84, %v76, %v38
    %v86 = vsel %vm84, %v79, %v48
    %v87 = vmul.f32 %v62, 0.01
    %v88 = vadd.f32 %v28, %v87
    %vm89 = vcmask 253952
    %90 = vst.msk [vmem:[#allocation6] sm:$0x1] %vm89, %v88
    %v91 = vsub.f32 %v48, %v29
    %v92 = vmul.f32 %v91, 0.01
    %v93 = vadd.f32 %v29, %v92
    %94 = vst.msk [vmem:[#allocation8] sm:$0x1] %vm89, %v93
    %v95 = vadd.f32 %v86, 0.001
    %v96 = vrsqrt.pop %v95
    %v97 = vld [vmem:[%s4] sm:$0x1]
    %v98 = vmul.f32 %v97, %v96
    %v99 = vld [vmem:[%s5] sm:$0x1]
    %v100 = vmul.f32 %v85, %v98
    %v101 = vsub.f32 %v99, %v100
    %v103 = vlaneseq
    %v104 = vshrl.u32 %v103, 7
    %v105 = vsub.s32 0, %v104
    %v106 = vrot.slane %v98, %v105
    %v108 = vmul.f32 %v27, %v106
    %v110 = vlaneseq
    %v111 = vshrl.u32 %v110, 7
    %v112 = vsub.s32 0, %v111
    %v113 = vrot.slane %v101, %v112
    %v115 = vadd.f32 %v108, %v113
    %116 = vst.msk [vmem:[#allocation4] sm:$0xff] %vm30, %v115
    // Predicated region
    $region22: #{batch_renorm_forward.1} parent=1 // pred_check
      _
    $region23: #{batch_renorm_forward.1} parent=1 // pred_check_branch
      %118 = sbr.rel (0) target = $region25
    $region24: #{batch_renorm_forward.1} parent=1 // pred_region
      %s120 = ssub.s32 128, 128
      %121 = vsyncadd [#allocation5], %s120
      %s123 = sshll.u32 [#allocation4], 4
      %s124 = int_to_ptr.vmem [resolvable:$true] %s123
      %126 = dma.vmem_to_hbm [thread:$0]  %s124, 128, %s6, [#allocation5]
    $region25: #{batch_renorm_forward.1} parent=1 // pred_fallthru
      _
    // Predicated region
    $region26: #{batch_renorm_forward.1} parent=1 // pred_check
      _
    $region27: #{batch_renorm_forward.1} parent=1 // pred_check_branch
      %128 = sbr.rel (0) target = $region29
    $region28: #{batch_renorm_forward.1} parent=1 // pred_region
      %s130 = ssub.s32 16, 16
      %131 = vsyncadd [#allocation7], %s130
      %s133 = sshll.u32 [#allocation6], 4
      %s134 = int_to_ptr.vmem [resolvable:$true] %s133
      %136 = dma.vmem_to_hbm [thread:$0]  %s134, 16, %s7, [#allocation7]
    $region29: #{batch_renorm_forward.1} parent=1 // pred_fallthru
      _
    // Predicated region
    $region30: #{batch_renorm_forward.1} parent=1 // pred_check
      _
    $region31: #{batch_renorm_forward.1} parent=1 // pred_check_branch
      %138 = sbr.rel (0) target = $region33
    $region32: #{batch_renorm_forward.1} parent=1 // pred_region
      %s140 = ssub.s32 16, 16
      %141 = vsyncadd [#allocation7], %s140
      %s143 = sshll.u32 [#allocation8], 4
      %s144 = int_to_ptr.vmem [resolvable:$true] %s143
      %146 = dma.vmem_to_hbm [thread:$0]  %s144, 16, %s8, [#allocation7]
    $region33: #{batch_renorm_forward.1} parent=1 // pred_fallthru
      _
    // Predicated region
    $region34: #{batch_renorm_forward.1} parent=1 // pred_check
      _
    $region35: #{batch_renorm_forward.1} parent=1 // pred_check_branch
      %148 = sbr.rel (0) target = $region37
    $region36: #{batch_renorm_forward.1} parent=1 // pred_region
      %149 = dma.done [#allocation5], 128
    $region37: #{batch_renorm_forward.1} parent=1 // pred_fallthru
      _
    // Predicated region
    $region38: #{batch_renorm_forward.1} parent=1 // pred_check
      _
    $region39: #{batch_renorm_forward.1} parent=1 // pred_check_branch
      %151 = sbr.rel (0) target = $region41
    $region40: #{batch_renorm_forward.1} parent=1 // pred_region
      %152 = dma.done [#allocation7], 16
    $region41: #{batch_renorm_forward.1} parent=1 // pred_fallthru
      _
    // Predicated region
    $region42: #{batch_renorm_forward.1} parent=1 // pred_check
      _
    $region43: #{batch_renorm_forward.1} parent=1 // pred_check_branch
      %154 = sbr.rel (0) target = $region45
    $region44: #{batch_renorm_forward.1} parent=1 // pred_region
      %155 = dma.done [#allocation7], 16
    $region45: #{batch_renorm_forward.1} parent=1 // pred_fallthru
      _
    %156 = vsyncpa [#allocation5], 1
    %157 = vsyncpa [#allocation7], 1

</llo_original>
